<compile_context>
chip_gen: v7x
topology: tpu7x:2x2x1
jax: 0.10.0
libtpu: 0.0.40
codegen_flags: <defaults>
</compile_context>

<pallas_src>
import math

import jax
import jax.numpy as jnp
from jax.experimental import pallas as pl
from jax.experimental.pallas import tpu as pltpu

LEAKY_RELU_SLOPE = 0.2
NEG_SENTINEL = -1e30  # finite "minus infinity" — avoids NaN on empty rows


def graph_attention_kernel(e1_ref, e2_ref, adj_ref, out_ref):
    # Outer sum: s[i, j] = e1[i] + e2[j]                       (tm, Np) f32
    s = e1_ref[...] + e2_ref[...]

    # LeakyReLU(0.2): max(s, 0.2*s) == leaky_relu(s) for 0 < slope < 1.
    s = jnp.maximum(s, LEAKY_RELU_SLOPE * s)

    # Mask non-edges (and padding columns) with a finite negative sentinel.
    s = jnp.where(adj_ref[...] != 0, s, NEG_SENTINEL)

    # Exact row softmax.  Write the un-normalized probabilities straight into
    # the output tile and rescale in place — one fewer (tm, Np) f32 temporary.
    m = jnp.max(s, axis=-1, keepdims=True)
    out_ref[...] = jnp.exp(s - m).astype(out_ref.dtype)
    denom = jnp.sum(out_ref[...].astype(jnp.float32), axis=-1, keepdims=True)
    inv = pl.reciprocal(denom, approx=False)
    out_ref[...] = (out_ref[...].astype(jnp.float32) * inv).astype(out_ref.dtype)


def _vmem_capacity_bytes():
    """Physical VMEM per TensorCore; conservative fallback if the query fails."""
    try:
        cap = getattr(pltpu.get_tpu_info(), "vmem_capacity_bytes", None)
        if cap:
            return int(cap)
    except Exception:
        pass
    return 64 * 1024 * 1024  # v7x per-TC size (smallest across generations)


def _pick_tm(Np, tm_cap, out_itemsize, tile_budget_bytes):
    """Largest multiple of 32 dividing Np whose per-step tiles fit the budget.

    Prefers an even number of row blocks so v7x's two TensorCores stay
    balanced (no effect on 1-TC v5e/v6e).  Multiple-of-32 satisfies both the
    f32/bf16 output and the int8 adjacency sublane tiling constraints.
    """
    tm_cap = max(32, (min(tm_cap, Np) // 32) * 32)
    # Per grid step: double-buffered out + adj tiles, plus ~2 f32-tile temps.
    bytes_per_row = Np * (2 * out_itemsize + 2 * 1 + 2 * 4)
    cands = [t for t in range(32, tm_cap + 1, 32)
             if Np % t == 0 and t * bytes_per_row <= tile_budget_bytes]
    if not cands:
        return 32
    even = [t for t in cands if (Np // t) % 2 == 0]
    return max(even) if even else max(cands)


def graph_attention(h, a, adjacency, *, tm=512, out_dtype=jnp.float32):
    """h: (N, F) f32, a: (F, 2) f32, adjacency: (N, N) bool -> (N, N) out_dtype."""
    N, F = h.shape

    # --- glue (outside the kernel): tiny projection + layout prep ----------
    e = (h.astype(jnp.float32) @ a.astype(jnp.float32))   # (N, 2) — trivial FLOPs
    Np = ((N + 127) // 128) * 128                         # lane-dense padding

    e1 = jnp.zeros((Np, 1), jnp.float32).at[:N, :].set(e[:, 0:1])
    e2 = jnp.zeros((1, Np), jnp.float32).at[:, :N].set(e[:, 1:2].T)
    adj = jnp.zeros((Np, Np), jnp.int8).at[:N, :N].set(adjacency.astype(jnp.int8))

    out_itemsize = jnp.dtype(out_dtype).itemsize
    vmem_cap = _vmem_capacity_bytes()
    vmem_limit = int(vmem_cap * 0.6)                      # ~38 MiB v7x, ~77 MiB v5e/v6e
    tm = _pick_tm(Np, tm, out_itemsize, int(vmem_cap * 0.45))
    # For very large graphs (Np >~ 16K-32K on v7x) full-row tiles get big even
    # at tm=32; the next step would be a second ("arbitrary") column grid axis
    # with an online (flash-style) softmax.  Not needed at these sizes.

    out = pl.pallas_call(
        graph_attention_kernel,
        out_shape=jax.ShapeDtypeStruct((Np, Np), out_dtype),
        grid_spec=pl.GridSpec(
            grid=(Np // tm,),
            in_specs=[
                pl.BlockSpec((tm, 1), lambda i: (i, 0)),    # e1 column slice
                pl.BlockSpec((1, Np), lambda i: (0, 0)),    # e2 row (resident)
                pl.BlockSpec((tm, Np), lambda i: (i, 0)),   # adjacency (int8)
            ],
            out_specs=pl.BlockSpec((tm, Np), lambda i: (i, 0)),
        ),
        compiler_params=pltpu.CompilerParams(
            dimension_semantics=("parallel",),              # independent row blocks
            vmem_limit_bytes=vmem_limit,
        ),
    )(e1, e2, adj)

    return out[:N, :N]


if __name__ == "__main__":
    key = jax.random.PRNGKey(0)
    k_h, k_a, k_adj = jax.random.split(key, 3)

    N, F = 16, 32  # nodes, features

    h = jax.random.normal(k_h, (N, F), dtype=jnp.float32)

    # Xavier-uniform init of `a` (shape (F, 2)), deterministic.
    bound = math.sqrt(6.0 / (F + 2))
    a = jax.random.uniform(k_a, (F, 2), dtype=jnp.float32,
                           minval=-bound, maxval=bound)

    adjacency = jax.random.bernoulli(k_adj, 0.4, (N, N))
    adjacency = adjacency | jnp.eye(N, dtype=bool)  # self-loops (no empty rows)

    # Pure-JAX reference (same math as the PyTorch module).
    e = h @ a
    s_ref = e[:, 0:1] + e[:, 1:2].T
    s_ref = jnp.where(s_ref >= 0, s_ref, LEAKY_RELU_SLOPE * s_ref)
    s_ref = jnp.where(adjacency, s_ref, -jnp.inf)
    m_ref = jnp.max(s_ref, axis=1, keepdims=True)
    p_ref = jnp.exp(s_ref - m_ref)
    ref = p_ref / jnp.sum(p_ref, axis=1, keepdims=True)

    # Default f32 path: matches the PyTorch module's numerics.
    out = jax.block_until_ready(graph_attention(h, a, adjacency))
    assert out.shape == (N, N)
    assert out.dtype == jnp.float32
    assert jnp.allclose(out, ref, atol=1e-5, rtol=1e-5), "f32 mismatch vs reference"

    # bf16 output path (halves the dominant HBM writeback on v5e/v6e).
    out_bf16 = jax.block_until_ready(
        graph_attention(h, a, adjacency, out_dtype=jnp.bfloat16))
    assert out_bf16.dtype == jnp.bfloat16
    assert jnp.allclose(out_bf16.astype(jnp.float32), ref, atol=2e-2, rtol=2e-2), \
        "bf16 mismatch vs reference"

    print("KERNEL_OK")
</pallas_src>

<mosaic_0001>
module attributes {stable_mosaic.version = 11 : i64} {
  func.func @graph_attention_kernel(%arg0: i32, %arg1: memref<64x1xf32, #tpu.memory_space<vmem>>, %arg2: memref<1x128xf32, #tpu.memory_space<vmem>>, %arg3: memref<64x128xi8, #tpu.memory_space<vmem>>, %arg4: memref<64x128xf32, #tpu.memory_space<vmem>>) attributes {dimension_semantics = [#tpu.dimension_semantics<parallel>], iteration_bounds = array<i64: 2>, scalar_prefetch = 0 : i64, scratch_operands = 0 : i64, tpu.core_type = #tpu.core_type<tc>, window_params = [{transform_indices = @transform_0, window_bounds = array<i64: 64, 1>}, {pipeline_mode = #tpu.pipeline_mode<synchronous>, transform_indices = @transform_1, window_bounds = array<i64: 1, 128>}, {transform_indices = @transform_2, window_bounds = array<i64: 64, 128>}, {transform_indices = @transform_3, window_bounds = array<i64: 64, 128>}]} {
    %c0 = arith.constant 0 : index
    %c0_0 = arith.constant 0 : index
    %0 = vector.load %arg1[%c0, %c0_0] : memref<64x1xf32, #tpu.memory_space<vmem>>, vector<64x1xf32>
    %c0_1 = arith.constant 0 : index
    %c0_2 = arith.constant 0 : index
    %1 = vector.load %arg2[%c0_1, %c0_2] : memref<1x128xf32, #tpu.memory_space<vmem>>, vector<1x128xf32>
    %2 = vector.broadcast %0 : vector<64x1xf32> to vector<64x128xf32>
    %3 = vector.broadcast %1 : vector<1x128xf32> to vector<64x128xf32>
    %4 = arith.addf %2, %3 : vector<64x128xf32>
    %cst = arith.constant 2.000000e-01 : f32
    %5 = vector.broadcast %cst : f32 to vector<64x128xf32>
    %6 = arith.mulf %5, %4 : vector<64x128xf32>
    %7 = arith.maximumf %4, %6 : vector<64x128xf32>
    %c0_3 = arith.constant 0 : index
    %c0_4 = arith.constant 0 : index
    %8 = vector.load %arg3[%c0_3, %c0_4] : memref<64x128xi8, #tpu.memory_space<vmem>>, vector<64x128xi8>
    %c0_i8 = arith.constant 0 : i8
    %9 = vector.broadcast %c0_i8 : i8 to vector<64x128xi8>
    %10 = arith.cmpi ne, %8, %9 : vector<64x128xi8>
    %cst_5 = arith.constant -1.000000e+30 : f32
    %11 = vector.broadcast %cst_5 : f32 to vector<64x128xf32>
    %12 = arith.select %10, %7, %11 : vector<64x128xi1>, vector<64x128xf32>
    %cst_6 = arith.constant dense<0xFF800000> : vector<64xf32>
    %13 = vector.multi_reduction <maximumf>, %12, %cst_6 [1] : vector<64x128xf32> to vector<64xf32>
    %14 = vector.shape_cast %13 : vector<64xf32> to vector<64x1xf32>
    %15 = vector.broadcast %14 : vector<64x1xf32> to vector<64x128xf32>
    %16 = arith.subf %12, %15 : vector<64x128xf32>
    %17 = math.exp %16 : vector<64x128xf32>
    %c0_7 = arith.constant 0 : index
    %c0_8 = arith.constant 0 : index
    %18 = vector.load %arg4[%c0_7, %c0_8] : memref<64x128xf32, #tpu.memory_space<vmem>>, vector<64x128xf32>
    tpu.vector_store %arg4[%c0_7, %c0_8], %17 {strides = array<i32>} : memref<64x128xf32, #tpu.memory_space<vmem>>, vector<64x128xf32>,
    %c0_9 = arith.constant 0 : index
    %c0_10 = arith.constant 0 : index
    %19 = vector.load %arg4[%c0_9, %c0_10] : memref<64x128xf32, #tpu.memory_space<vmem>>, vector<64x128xf32>
    %cst_11 = arith.constant dense<0.000000e+00> : vector<64xf32>
    %20 = vector.multi_reduction <add>, %19, %cst_11 [1] : vector<64x128xf32> to vector<64xf32>
    %21 = vector.shape_cast %20 : vector<64xf32> to vector<64x1xf32>
    %22 = tpu.reciprocal %21 : vector<64x1xf32> -> vector<64x1xf32>
    %c0_12 = arith.constant 0 : index
    %c0_13 = arith.constant 0 : index
    %23 = vector.load %arg4[%c0_12, %c0_13] : memref<64x128xf32, #tpu.memory_space<vmem>>, vector<64x128xf32>
    %24 = vector.broadcast %22 : vector<64x1xf32> to vector<64x128xf32>
    %25 = arith.mulf %23, %24 : vector<64x128xf32>
    %c0_14 = arith.constant 0 : index
    %c0_15 = arith.constant 0 : index
    %26 = vector.load %arg4[%c0_14, %c0_15] : memref<64x128xf32, #tpu.memory_space<vmem>>, vector<64x128xf32>
    tpu.vector_store %arg4[%c0_14, %c0_15], %25 {strides = array<i32>} : memref<64x128xf32, #tpu.memory_space<vmem>>, vector<64x128xf32>,
    return
  }
  func.func @transform_0(%arg0: i32) -> (i32, i32) {
    %c0_i32 = arith.constant 0 : i32
    %c0_i32_0 = arith.constant 0 : i32
    return %arg0, %c0_i32 : i32, i32
  }
  func.func @transform_1(%arg0: i32) -> (i32, i32) {
    %c0_i32 = arith.constant 0 : i32
    %c0_i32_0 = arith.constant 0 : i32
    %c0_i32_1 = arith.constant 0 : i32
    return %c0_i32, %c0_i32_0 : i32, i32
  }
  func.func @transform_2(%arg0: i32) -> (i32, i32) {
    %c0_i32 = arith.constant 0 : i32
    %c0_i32_0 = arith.constant 0 : i32
    return %arg0, %c0_i32 : i32, i32
  }
  func.func @transform_3(%arg0: i32) -> (i32, i32) {
    %c0_i32 = arith.constant 0 : i32
    %c0_i32_0 = arith.constant 0 : i32
    return %arg0, %c0_i32 : i32, i32
  }
}

</mosaic_0001>

<llo_original>
// kernel: tpu_custom_call.1
$region0: #{tpu_custom_call.1}
  #allocation0 [shape = 'u32[]', space=smem, size = 0x4, offset = 0x4, fixed_abs, tag = 'smem constant byte address 0x4 - core index']
  #allocation1 [shape = 'u32[144,128]{1,0:T(1,128)}', space=vmem, size = 0x12000, scoped, tag = 'internal scratch']
  %s0 = inlined_call_operand.vmem [shape: f32[128,1], index: 0, kind: input, shape index: {}]
  %s1 = inlined_call_operand.vmem [shape: f32[1,128], index: 1, kind: input, shape index: {}]
  %s2 = inlined_call_operand.vmem [shape: s8[128,128], index: 2, kind: input, shape index: {}]
  %s3 = inlined_call_operand.hbm [shape: f32[128,128], index: 3, kind: output, shape index: {}]
  %s4 = sld [smem:[#allocation0]]
  $region45: #{tpu_custom_call.1} parent=0
    _
  %s6 = ssub.s32 1, %s4
  %s7 = scalar_select 0, %s6, %s4
  $region1: #{tpu_custom_call.1} parent=0
    #allocation2 [shape = 'u8[65536]{0}', space=vmem, size = 0x10000, scoped, tag = 'output window, operand 0']
    #allocation3 [shape = 's32[2]{0}', space=sflag, size = 0x8, scoped, tag = 'scoped memory for tpu_custom_call.1']
    %8 = vsyncpa [#allocation3], 0
    %s9 = scalar_lea.sflag [#allocation3], 1
    %10 = vsyncpa %s9, 0
    loop: start=0, step=1, limit=4
    $region2: #{tpu_custom_call.1} parent=1 // loop_pre_header
      _
    $region3: #{tpu_custom_call.1} parent=1 // loop_header
      %s12 = sphi 0, %s16
      %p13 = scmp.ge.s32.totalorder %s12, 4
      %s22 = sphi 0, %s24
      %s25 = sphi 0, %s22
      %s26 = sphi 0, %s25
      %s42 = sphi 0, %s26
      %s46 = sphi 0, %s46
      %s48 = sphi 0, %s46
      %s49 = sphi 0, %s48
      %s63 = sphi 0, %s49
      %s69 = sphi 0, %s71
      %s72 = sphi 0, %s69
      %s73 = sphi 0, %s72
      %s89 = sphi 0, %s73
      %s95 = sphi 0, %s97
      %s98 = sphi 0, %s95
      %s99 = sphi 0, %s98
      %s115 = sphi 0, %s99
    $region4: #{tpu_custom_call.1} parent=1 // loop_header_branch
      %15 = sbr.rel (%p13) target = $region8
    $region5: #{tpu_custom_call.1} parent=1 // loop_body
      %s17 = ssub.s32 %s12, 1
      %s18 = ssub.s32 %s12, 2
      %s19 = sadd.s32 %s12, 1
      %s20 = ssub.s32 %s12, %s19
      %p21 = scmp.eq.s32.totalorder %s20, 0
      %s23 = sadd.s32 %s22, 1
      %s24 = scalar_select %p21, %s22, %s23
      %p27 = pneg %p21
      %p28 = scmp.eq.s32.totalorder %s12, 1
      %p29 = por %p27, %p28
      %p30 = scmp.ne.s32.totalorder %s22, %s25
      %p31 = scmp.eq.s32.totalorder %s12, 0
      %p32 = por %p30, %p31
      %p33 = scmp.ne.s32.totalorder %s22, %s25
      %p34 = scmp.eq.s32.totalorder %s17, 1
      %p35 = por %p33, %p34
      %p36 = scmp.ne.s32.totalorder %s25, %s26
      %p37 = scmp.eq.s32.totalorder %s17, 0
      %p38 = por %p36, %p37
      %p39 = scmp.ne.s32.totalorder %s25, %s26
      %p40 = scmp.eq.s32.totalorder %s18, 1
      %p41 = por %p39, %p40
      %p43 = scmp.ne.s32.totalorder %s26, %s42
      %p44 = scmp.eq.s32.totalorder %s18, 0
      %p45 = por %p43, %p44
      %s47 = sadd.s32 %s46, 1
      %p50 = scmp.eq.s32.totalorder %s12, 1
      %p51 = scmp.ne.s32.totalorder %s46, %s48
      %p52 = scmp.eq.s32.totalorder %s12, 0
      %p53 = por %p51, %p52
      %p54 = scmp.ne.s32.totalorder %s46, %s48
      %p55 = scmp.eq.s32.totalorder %s17, 1
      %p56 = por %p54, %p55
      %p57 = scmp.ne.s32.totalorder %s48, %s49
      %p58 = scmp.eq.s32.totalorder %s17, 0
      %p59 = por %p57, %p58
      %p60 = scmp.ne.s32.totalorder %s48, %s49
      %p61 = scmp.eq.s32.totalorder %s18, 1
      %p62 = por %p60, %p61
      %p64 = scmp.ne.s32.totalorder %s49, %s63
      %p65 = scmp.eq.s32.totalorder %s18, 0
      %p66 = por %p64, %p65
      %s67 = ssub.s32 %s12, %s19
      %p68 = scmp.eq.s32.totalorder %s67, 0
      %s70 = sadd.s32 %s69, 1
      %s71 = scalar_select %p68, %s69, %s70
      %p74 = pneg %p68
      %p75 = scmp.eq.s32.totalorder %s12, 1
      %p76 = por %p74, %p75
      %p77 = scmp.ne.s32.totalorder %s69, %s72
      %p78 = scmp.eq.s32.totalorder %s12, 0
      %p79 = por %p77, %p78
      %p80 = scmp.ne.s32.totalorder %s69, %s72
      %p81 = scmp.eq.s32.totalorder %s17, 1
      %p82 = por %p80, %p81
      %p83 = scmp.ne.s32.totalorder %s72, %s73
      %p84 = scmp.eq.s32.totalorder %s17, 0
      %p85 = por %p83, %p84
      %p86 = scmp.ne.s32.totalorder %s72, %s73
      %p87 = scmp.eq.s32.totalorder %s18, 1
      %p88 = por %p86, %p87
      %p90 = scmp.ne.s32.totalorder %s73, %s89
      %p91 = scmp.eq.s32.totalorder %s18, 0
      %p92 = por %p90, %p91
      %s93 = ssub.s32 %s12, %s19
      %p94 = scmp.eq.s32.totalorder %s93, 0
      %s96 = sadd.s32 %s95, 1
      %s97 = scalar_select %p94, %s95, %s96
      %p100 = pneg %p94
      %p101 = scmp.eq.s32.totalorder %s12, 1
      %p102 = por %p100, %p101
      %p103 = scmp.ne.s32.totalorder %s95, %s98
      %p104 = scmp.eq.s32.totalorder %s12, 0
      %p105 = por %p103, %p104
      %p106 = scmp.ne.s32.totalorder %s95, %s98
      %p107 = scmp.eq.s32.totalorder %s17, 1
      %p108 = por %p106, %p107
      %p109 = scmp.ne.s32.totalorder %s98, %s99
      %p110 = scmp.eq.s32.totalorder %s17, 0
      %p111 = por %p109, %p110
      %p112 = scmp.ne.s32.totalorder %s98, %s99
      %p113 = scmp.eq.s32.totalorder %s18, 1
      %p114 = por %p112, %p113
      %p116 = scmp.ne.s32.totalorder %s99, %s115
      %p117 = scmp.eq.s32.totalorder %s18, 0
      %p118 = por %p116, %p117
      %p119 = scmp.le.s32.totalorder 1, %s12
      %p120 = scmp.lt.s32.totalorder %s12, 3
      %p121 = pnand %p119, %p120
      %p122 = pneg %p121
      // Predicated region
      $region9: #{tpu_custom_call.1} parent=5 // pred_check
        _
      $region10: #{tpu_custom_call.1} parent=5 // pred_check_branch
        %124 = sbr.rel (%p121) target = $region12
      $region11: #{tpu_custom_call.1} parent=5 // pred_region
        %s125 = ssub.s32 %s12, 1
        // Predicated region
        $region13: #{tpu_custom_call.1} parent=11 // pred_check
          %p126 = pneg %p59
        $region14: #{tpu_custom_call.1} parent=11 // pred_check_branch
          %128 = sbr.rel (%p126) target = $region16
        $region15: #{tpu_custom_call.1} parent=11 // pred_region
          _
        $region16: #{tpu_custom_call.1} parent=11 // pred_fallthru
          _
      $region12: #{tpu_custom_call.1} parent=5 // pred_fallthru
        _
      %p129 = scmp.lt.s32.totalorder %s12, 2
      // Predicated region
      $region17: #{tpu_custom_call.1} parent=5 // pred_check
        %p130 = pneg %p129
      $region18: #{tpu_custom_call.1} parent=5 // pred_check_branch
        %132 = sbr.rel (%p130) target = $region20
      $region19: #{tpu_custom_call.1} parent=5 // pred_region
        // Predicated region
        $region21: #{tpu_custom_call.1} parent=19 // pred_check
          %p133 = pneg %p32
        $region22: #{tpu_custom_call.1} parent=19 // pred_check_branch
          %135 = sbr.rel (%p133) target = $region24
        $region23: #{tpu_custom_call.1} parent=19 // pred_region
          %s136 = smul.u32 8, %s12
          %p137 = scmp.lt.s32.totalorder %s136, 15
          %s138 = scalar_select %p137, %s136, 15
          %s139 = smul.addr %s138, 8
          %s140 = scalar_lea.vmem %s0, %s139
          %s141 = smul.u32 8, %s12
        $region24: #{tpu_custom_call.1} parent=19 // pred_fallthru
          _
        // Predicated region
        $region25: #{tpu_custom_call.1} parent=19 // pred_check
          %p142 = pneg %p79
        $region26: #{tpu_custom_call.1} parent=19 // pred_check_branch
          %144 = sbr.rel (%p142) target = $region28
        $region27: #{tpu_custom_call.1} parent=19 // pred_region
          %s145 = smul.u32 2, %s12
          %p146 = scmp.lt.s32.totalorder %s145, 3
          %s147 = scalar_select %p146, %s145, 3
          %s148 = smul.addr %s147, 8
          %s149 = scalar_lea.vmem %s2, %s148
          %s150 = smul.u32 2, %s12
        $region28: #{tpu_custom_call.1} parent=19 // pred_fallthru
          _
      $region20: #{tpu_custom_call.1} parent=5 // pred_fallthru
        _
      %p151 = scmp.le.s32.totalorder 1, %s12
      %p152 = scmp.lt.s32.totalorder %s12, 3
      %p153 = pnand %p151, %p152
      %p154 = pneg %p153
      // Predicated region
      $region29: #{tpu_custom_call.1} parent=5 // pred_check
        _
      $region30: #{tpu_custom_call.1} parent=5 // pred_check_branch
        %156 = sbr.rel (%p153) target = $region32
      $region31: #{tpu_custom_call.1} parent=5 // pred_region
        %s157 = ssub.s32 %s12, 1
        %s158 = smul.u32 8, %s17
        %p159 = scmp.lt.s32.totalorder %s158, 15
        %s160 = scalar_select %p159, %s158, 15
        %s161 = smul.addr %s160, 8
        %s162 = scalar_lea.vmem %s0, %s161
        %p163 = pneg %p38
        %p164 = pneg %p35
        %p165 = pneg %p59
        %p166 = pneg %p56
        %s167 = smul.u32 2, %s17
        %p168 = scmp.lt.s32.totalorder %s167, 3
        %s169 = scalar_select %p168, %s167, 3
        %s170 = smul.addr %s169, 8
        %s171 = scalar_lea.vmem %s2, %s170
        %p172 = pneg %p85
        %p173 = pneg %p82
        %p174 = pneg %p111
        %p175 = pneg %p108
        %s176 = sand.u32 %s98, 1
        %s177 = scalar_lea.sflag [#allocation3], %s176
        %s178 = sand.u32 %s98, 1
        %s179 = smul.addr %s178, 64
        %s180 = scalar_lea.vmem [#allocation2], %s179
        %s181 = smul.u32 8, %s17
        %p182 = scmp.lt.s32.totalorder %s181, 15
        %s183 = scalar_select %p182, %s181, 15
        %s184 = smul.addr %s183, 8
        %s185 = scalar_lea.vmem %s0, %s184
        %s186 = smul.u32 8, %s17
        %s187 = smul.u32 2, %s17
        %p188 = scmp.lt.s32.totalorder %s187, 3
        %s189 = scalar_select %p188, %s187, 3
        %s190 = smul.addr %s189, 8
        %s191 = scalar_lea.vmem %s2, %s190
        %s192 = smul.u32 2, %s17
        %s193 = smul.u32 8, %s17
        %v196 = vld [vmem:[%s185] sm:$0xff]
        %v197 = vld [vmem:[%s185 + $0x8] sm:$0xff]
        %v198 = vld [vmem:[%s185 + $0x10] sm:$0xff]
        %v199 = vld [vmem:[%s185 + $0x18] sm:$0xff]
        %v200 = vld [vmem:[%s185 + $0x20] sm:$0xff]
        %v201 = vld [vmem:[%s185 + $0x28] sm:$0xff]
        %v202 = vld [vmem:[%s185 + $0x30] sm:$0xff]
        %v203 = vld [vmem:[%s185 + $0x38] sm:$0xff]
        %v204 = vld [vmem:[%s1] sm:$0x1]
        %206 = vset.pattern.permute.xlu0 0
        %207 = vperm.xlu0 %206, %v196
        %v208 = vpop.permute.xlu0 %207
        %211 = vset.pattern.permute.xlu0 0
        %212 = vperm.xlu0 %211, %v197
        %v213 = vpop.permute.xlu0 %212
        %216 = vset.pattern.permute.xlu0 0
        %217 = vperm.xlu0 %216, %v198
        %v218 = vpop.permute.xlu0 %217
        %221 = vset.pattern.permute.xlu0 0
        %222 = vperm.xlu0 %221, %v199
        %v223 = vpop.permute.xlu0 %222
        %226 = vset.pattern.permute.xlu0 0
        %227 = vperm.xlu0 %226, %v200
        %v228 = vpop.permute.xlu0 %227
        %231 = vset.pattern.permute.xlu0 0
        %232 = vperm.xlu0 %231, %v201
        %v233 = vpop.permute.xlu0 %232
        %236 = vset.pattern.permute.xlu0 0
        %237 = vperm.xlu0 %236, %v202
        %v238 = vpop.permute.xlu0 %237
        %241 = vset.pattern.permute.xlu0 0
        %242 = vperm.xlu0 %241, %v203
        %v243 = vpop.permute.xlu0 %242
        %v246 = vlaneseq
        %v247 = vshrl.u32 %v246, 7
        %v248 = vsub.s32 0, %v247
        %v249 = vrot.slane %v204, %v248
        %v251 = vadd.f32 %v208, %v249
        %v252 = vadd.f32 %v213, %v249
        %v253 = vadd.f32 %v218, %v249
        %v254 = vadd.f32 %v223, %v249
        %v255 = vadd.f32 %v228, %v249
        %v256 = vadd.f32 %v233, %v249
        %v257 = vadd.f32 %v238, %v249
        %v258 = vadd.f32 %v243, %v249
        %v259 = vmul.f32 %v251, 0.2
        %v260 = vmul.f32 %v252, 0.2
        %v261 = vmul.f32 %v253, 0.2
        %v262 = vmul.f32 %v254, 0.2
        %v263 = vmul.f32 %v255, 0.2
        %v264 = vmul.f32 %v256, 0.2
        %v265 = vmul.f32 %v257, 0.2
        %v266 = vmul.f32 %v258, 0.2
        %v267 = vmax.f32 %v251, %v259
        %v268 = vmax.f32 %v252, %v260
        %v269 = vmax.f32 %v253, %v261
        %v270 = vmax.f32 %v254, %v262
        %v271 = vmax.f32 %v255, %v263
        %v272 = vmax.f32 %v256, %v264
        %v273 = vmax.f32 %v257, %v265
        %v274 = vmax.f32 %v258, %v266
        %v275 = vld [vmem:[%s191] sm:$0xff]
        %v276 = vld [vmem:[%s191 + $0x8] sm:$0xff]
        %vm277 = vnez %v275
        %vm278 = vnez %v276
        %v279 = vsel %vm277, 16843009, 0
        %v280 = vsel %vm278, 16843009, 0
        %v281 = vunpack.c.0.s8 %v279
        %v282 = vunpack.c.1.s8 %v279
        %v283 = vunpack.c.2.s8 %v279
        %v284 = vunpack.c.3.s8 %v279
        %v285 = vunpack.c.0.s8 %v280
        %v286 = vunpack.c.1.s8 %v280
        %v287 = vunpack.c.2.s8 %v280
        %v288 = vunpack.c.3.s8 %v280
        %v289 = vpack.c.b16 %v281, %v281
        %v290 = vpack.c.b8 %v289, %v289
        %v291 = vpack.c.b16 %v282, %v282
        %v292 = vpack.c.b8 %v291, %v291
        %v293 = vpack.c.b16 %v283, %v283
        %v294 = vpack.c.b8 %v293, %v293
        %v295 = vpack.c.b16 %v284, %v284
        %v296 = vpack.c.b8 %v295, %v295
        %v297 = vpack.c.b16 %v285, %v285
        %v298 = vpack.c.b8 %v297, %v297
        %v299 = vpack.c.b16 %v286, %v286
        %v300 = vpack.c.b8 %v299, %v299
        %v301 = vpack.c.b16 %v287, %v287
        %v302 = vpack.c.b8 %v301, %v301
        %v303 = vpack.c.b16 %v288, %v288
        %v304 = vpack.c.b8 %v303, %v303
        %vm305 = vnez %v290
        %vm306 = vnez %v292
        %vm307 = vnez %v294
        %vm308 = vnez %v296
        %vm309 = vnez %v298
        %vm310 = vnez %v300
        %vm311 = vnez %v302
        %vm312 = vnez %v304
        %v313 = vsel %vm305, 16843009, 0
        %v314 = vsel %vm306, 16843009, 0
        %v315 = vsel %vm307, 16843009, 0
        %v316 = vsel %vm308, 16843009, 0
        %v317 = vsel %vm309, 16843009, 0
        %v318 = vsel %vm310, 16843009, 0
        %v319 = vsel %vm311, 16843009, 0
        %v320 = vsel %vm312, 16843009, 0
        %v321 = vunpack.c.0.s8 %v313
        %v322 = vunpack.c.0.s8 %v314
        %v323 = vunpack.c.0.s8 %v315
        %v324 = vunpack.c.0.s8 %v316
        %v325 = vunpack.c.0.s8 %v317
        %v326 = vunpack.c.0.s8 %v318
        %v327 = vunpack.c.0.s8 %v319
        %v328 = vunpack.c.0.s8 %v320
        %vm329 = vcmp.ne.s32.totalorder %v321, 0
        %vm330 = vcmp.ne.s32.totalorder %v322, 0
        %vm331 = vcmp.ne.s32.totalorder %v323, 0
        %vm332 = vcmp.ne.s32.totalorder %v324, 0
        %vm333 = vcmp.ne.s32.totalorder %v325, 0
        %vm334 = vcmp.ne.s32.totalorder %v326, 0
        %vm335 = vcmp.ne.s32.totalorder %v327, 0
        %vm336 = vcmp.ne.s32.totalorder %v328, 0
        %v337 = vsel %vm329, %v267, -1e+30
        %v338 = vsel %vm330, %v268, -1e+30
        %v339 = vsel %vm331, %v269, -1e+30
        %v340 = vsel %vm332, %v270, -1e+30
        %v341 = vsel %vm333, %v271, -1e+30
        %v342 = vsel %vm334, %v272, -1e+30
        %v343 = vsel %vm335, %v273, -1e+30
        %v344 = vsel %vm336, %v274, -1e+30
        %345 = vmax.xlane.f32.xlu0 %v337
        %v346 = vpop.xlane.xlu0 %345
        %347 = vmax.xlane.f32.xlu0 %v338
        %v348 = vpop.xlane.xlu0 %347
        %349 = vmax.xlane.f32.xlu0 %v339
        %v350 = vpop.xlane.xlu0 %349
        %351 = vmax.xlane.f32.xlu0 %v340
        %v352 = vpop.xlane.xlu0 %351
        %353 = vmax.xlane.f32.xlu0 %v341
        %v354 = vpop.xlane.xlu0 %353
        %355 = vmax.xlane.f32.xlu0 %v342
        %v356 = vpop.xlane.xlu0 %355
        %357 = vmax.xlane.f32.xlu0 %v343
        %v358 = vpop.xlane.xlu0 %357
        %359 = vmax.xlane.f32.xlu0 %v344
        %v360 = vpop.xlane.xlu0 %359
        %v361 = vsub.f32 %v337, %v346
        %v362 = vsub.f32 %v338, %v348
        %v363 = vsub.f32 %v339, %v350
        %v364 = vsub.f32 %v340, %v352
        %v365 = vsub.f32 %v341, %v354
        %v366 = vsub.f32 %v342, %v356
        %v367 = vsub.f32 %v343, %v358
        %v368 = vsub.f32 %v344, %v360
        %v369 = vmul.f32 %v361, 1.442695
        %v370 = vpow.pop %v369
        %v371 = vmul.f32 %v362, 1.442695
        %v372 = vpow.pop %v371
        %v373 = vmul.f32 %v363, 1.442695
        %v374 = vpow.pop %v373
        %v375 = vmul.f32 %v364, 1.442695
        %v376 = vpow.pop %v375
        %v377 = vmul.f32 %v365, 1.442695
        %v378 = vpow.pop %v377
        %v379 = vmul.f32 %v366, 1.442695
        %v380 = vpow.pop %v379
        %v381 = vmul.f32 %v367, 1.442695
        %v382 = vpow.pop %v381
        %v383 = vmul.f32 %v368, 1.442695
        %v384 = vpow.pop %v383
        %385 = vst [vmem:[%s180] sm:$0xff] %v370
        %386 = vst [vmem:[%s180 + $0x8] sm:$0xff] %v372
        %387 = vst [vmem:[%s180 + $0x10] sm:$0xff] %v374
        %388 = vst [vmem:[%s180 + $0x18] sm:$0xff] %v376
        %389 = vst [vmem:[%s180 + $0x20] sm:$0xff] %v378
        %390 = vst [vmem:[%s180 + $0x28] sm:$0xff] %v380
        %391 = vst [vmem:[%s180 + $0x30] sm:$0xff] %v382
        %392 = vst [vmem:[%s180 + $0x38] sm:$0xff] %v384
        %v393 = vld [vmem:[%s180] sm:$0xff]
        %v394 = vld [vmem:[%s180 + $0x8] sm:$0xff]
        %v395 = vld [vmem:[%s180 + $0x10] sm:$0xff]
        %v396 = vld [vmem:[%s180 + $0x18] sm:$0xff]
        %v397 = vld [vmem:[%s180 + $0x20] sm:$0xff]
        %v398 = vld [vmem:[%s180 + $0x28] sm:$0xff]
        %v399 = vld [vmem:[%s180 + $0x30] sm:$0xff]
        %v400 = vld [vmem:[%s180 + $0x38] sm:$0xff]
        %401 = vadd.xlane.f32.xlu0 %v393
        %v402 = vpop.xlane.xlu0 %401
        %403 = vadd.xlane.f32.xlu0 %v394
        %v404 = vpop.xlane.xlu0 %403
        %405 = vadd.xlane.f32.xlu0 %v395
        %v406 = vpop.xlane.xlu0 %405
        %407 = vadd.xlane.f32.xlu0 %v396
        %v408 = vpop.xlane.xlu0 %407
        %409 = vadd.xlane.f32.xlu0 %v397
        %v410 = vpop.xlane.xlu0 %409
        %411 = vadd.xlane.f32.xlu0 %v398
        %v412 = vpop.xlane.xlu0 %411
        %413 = vadd.xlane.f32.xlu0 %v399
        %v414 = vpop.xlane.xlu0 %413
        %415 = vadd.xlane.f32.xlu0 %v400
        %v416 = vpop.xlane.xlu0 %415
        %v417 = vrcp.pop %v402
        %v418 = vrcp.pop %v404
        %v419 = vrcp.pop %v406
        %v420 = vrcp.pop %v408
        %v421 = vrcp.pop %v410
        %v422 = vrcp.pop %v412
        %v423 = vrcp.pop %v414
        %v424 = vrcp.pop %v416
        %v425 = vmul.f32 %v393, %v417
        %v426 = vmul.f32 %v394, %v418
        %v427 = vmul.f32 %v395, %v419
        %v428 = vmul.f32 %v396, %v420
        %v429 = vmul.f32 %v397, %v421
        %v430 = vmul.f32 %v398, %v422
        %v431 = vmul.f32 %v399, %v423
        %v432 = vmul.f32 %v400, %v424
        %433 = vst [vmem:[%s180] sm:$0xff] %v425
        %434 = vst [vmem:[%s180 + $0x8] sm:$0xff] %v426
        %435 = vst [vmem:[%s180 + $0x10] sm:$0xff] %v427
        %436 = vst [vmem:[%s180 + $0x18] sm:$0xff] %v428
        %437 = vst [vmem:[%s180 + $0x20] sm:$0xff] %v429
        %438 = vst [vmem:[%s180 + $0x28] sm:$0xff] %v430
        %439 = vst [vmem:[%s180 + $0x30] sm:$0xff] %v431
        %440 = vst [vmem:[%s180 + $0x38] sm:$0xff] %v432
        %s441 = sand.u32 %s98, 1
        %s442 = scalar_lea.sflag [#allocation3], %s441
        %s443 = sand.u32 %s98, 1
        %s444 = smul.addr %s443, 64
        %s445 = scalar_lea.vmem [#allocation2], %s444
        // Predicated region
        $region33: #{tpu_custom_call.1} parent=31 // pred_check
          %p446 = pneg %p108
        $region34: #{tpu_custom_call.1} parent=31 // pred_check_branch
          %448 = sbr.rel (%p446) target = $region36
        $region35: #{tpu_custom_call.1} parent=31 // pred_region
          %s449 = smul.u32 8, %s17
          %s451 = ssub.s32 1024, 1024
          %452 = vsyncadd %s442, %s451
          %s453 = smul.addr %s449, 128
          %s454 = scalar_lea.hbm %s3, %s453
          %s455 = sshll.u32 %s445, 4
          %s456 = int_to_ptr.vmem [resolvable:$true] %s455
          %461 = dma.vmem_to_hbm [thread:$0]  %s456, 1024, %s454, %s442, 128, 128, 8
        $region36: #{tpu_custom_call.1} parent=31 // pred_fallthru
          _
      $region32: #{tpu_custom_call.1} parent=5 // pred_fallthru
        _
      %p462 = scmp.le.s32.totalorder 2, %s12
      // Predicated region
      $region37: #{tpu_custom_call.1} parent=5 // pred_check
        %p463 = pneg %p462
      $region38: #{tpu_custom_call.1} parent=5 // pred_check_branch
        %465 = sbr.rel (%p463) target = $region40
      $region39: #{tpu_custom_call.1} parent=5 // pred_region
        %s466 = ssub.s32 %s12, 2
        // Predicated region
        $region41: #{tpu_custom_call.1} parent=39 // pred_check
          %p467 = pneg %p114
        $region42: #{tpu_custom_call.1} parent=39 // pred_check_branch
          %469 = sbr.rel (%p467) target = $region44
        $region43: #{tpu_custom_call.1} parent=39 // pred_region
          %s470 = sand.u32 %s99, 1
          %s471 = scalar_lea.sflag [#allocation3], %s470
          %s472 = sand.u32 %s99, 1
          %s473 = smul.addr %s472, 64
          %s474 = scalar_lea.vmem [#allocation2], %s473
          %475 = dma.done %s471, 1024
        $region44: #{tpu_custom_call.1} parent=39 // pred_fallthru
          _
      $region40: #{tpu_custom_call.1} parent=5 // pred_fallthru
        _
    $region6: #{tpu_custom_call.1} parent=1 // loop_footer
      %s16 = sadd.s32 1, %s12
    $region7: #{tpu_custom_call.1} parent=1 // loop_footer_branch
      %11 = sbr.rel target = $region3
    $region8: #{tpu_custom_call.1} parent=1 // loop_exit
      _
    %476 = vsyncpa [#allocation3], 1
    %s477 = scalar_lea.sflag [#allocation3], 1
    %478 = vsyncpa %s477, 1

</llo_original>
